<compile_context>
chip_gen: v7x
topology: tpu7x:2x2x1
jax: 0.10.0
libtpu: 0.0.40
codegen_flags: <defaults>
</compile_context>

<pallas_src>
import jax
import jax.numpy as jnp
from jax import lax
from jax.experimental import pallas as pl
from jax.experimental.pallas import tpu as pltpu


def _make_kernel(return_attention, compute_dtype):
    def kernel(ri1_ref, ri2_ref, re2_ref, *out_refs):
        if return_attention:
            emb_ref, attn_ref = out_refs
        else:
            (emb_ref,) = out_refs

        ri1 = ri1_ref[...]   # (C, TL1)
        ri2 = ri2_ref[...]   # (C, L2)
        re2 = re2_ref[...]   # (E, L2)
        if compute_dtype is not None:
            ri1 = ri1.astype(compute_dtype)
            ri2 = ri2.astype(compute_dtype)
            re2 = re2.astype(compute_dtype)

        # scores (L2, TL1) = RI_2^T @ RI_1 : contract the channel axis (dim 0
        # of both operands); f32 accumulation on the MXU.
        s = lax.dot_general(
            ri2, ri1, (((0,), (0,)), ((), ())),
            preferred_element_type=jnp.float32,
        )

        # Softmax over the L2 (sublane) axis — independently per L1 column.
        m = jnp.max(s, axis=0, keepdims=True)
        e = jnp.exp(s - m)
        denom = jnp.sum(e, axis=0, keepdims=True)
        # EUP reciprocal + one Newton refinement on the (1, TL1) denominator
        # replaces a full (L2, TL1) VALU divide while keeping ~f32 accuracy.
        inv = pl.reciprocal(denom, approx=True)
        inv = inv * (2.0 - denom * inv)
        a = e * inv

        if return_attention:
            attn_ref[...] = a.astype(attn_ref.dtype)

        # RE_embed (E, TL1) = RE_2 @ A
        emb = jnp.dot(re2, a.astype(re2.dtype),
                      preferred_element_type=jnp.float32)
        emb_ref[...] = emb.astype(emb_ref.dtype)

    return kernel


def _vmem_capacity_bytes():
    """Physical VMEM of the attached chip; conservative (v7x) fallback."""
    try:
        cap = int(getattr(pltpu.get_tpu_info(), "vmem_capacity_bytes", 0))
        if cap > 0:
            return cap
    except Exception:
        pass
    return 64 * 1024 * 1024


def _tile_vmem_bytes(tl1, C, E, L2, in_isz, emb_isz, attn_isz, return_attention):
    """Estimated per-step VMEM: double-buffered blocks + softmax temporaries."""
    dbl = 2  # BlockSpec double-buffering
    inputs = dbl * (C * tl1 + C * L2 + E * L2) * in_isz
    outputs = dbl * (E * tl1 * emb_isz
                     + (L2 * tl1 * attn_isz if return_attention else 0))
    temps = 3 * L2 * tl1 * 4   # s / e / a live f32 intermediates
    return inputs + outputs + temps


def _pick_l1_tile(L1, C, E, L2, in_isz, emb_isz, attn_isz, return_attention,
                  budget, single_batch):
    if L1 <= 128:
        # One full-width block: block dims equal to the array dims are legal.
        return L1
    candidates = [t for t in (1024, 512, 256, 128) if t <= L1]
    if single_batch:
        # v7x megacore: guarantee >= 2 grid steps along L1 when B == 1.
        half = max(128, ((L1 + 1) // 2) // 128 * 128)
        candidates = [min(t, half) for t in candidates]
    for t in candidates:
        if _tile_vmem_bytes(t, C, E, L2, in_isz, emb_isz, attn_isz,
                            return_attention) <= budget:
            return t
    return 128


def aligner_forward(ri_1, ri_2, re_2, *, compute_dtype=None,
                    attention_dtype=None, return_attention=True):
    """RI_1 (B,C,L1), RI_2 (B,C,L2), RE_2 (B,E,L2) ->
       (RE_embed (B,E,L1), attention_map (B,L2,L1))."""
    B, C, L1 = ri_1.shape
    _, _, L2 = ri_2.shape
    E = re_2.shape[1]
    out_dtype = ri_1.dtype
    attn_dtype = attention_dtype if attention_dtype is not None else out_dtype

    in_isz = jnp.dtype(ri_1.dtype).itemsize
    emb_isz = jnp.dtype(out_dtype).itemsize
    attn_isz = jnp.dtype(attn_dtype).itemsize

    capacity = _vmem_capacity_bytes()
    budget = int(0.6 * capacity)   # leave headroom for compiler scratch
    tl1 = _pick_l1_tile(L1, C, E, L2, in_isz, emb_isz, attn_isz,
                        return_attention, budget, single_batch=(B == 1))
    grid = (B, pl.cdiv(L1, tl1))

    need = _tile_vmem_bytes(tl1, C, E, L2, in_isz, emb_isz, attn_isz,
                            return_attention)
    vmem_limit = int(min(0.8 * capacity, max(need + (8 << 20), 32 << 20)))

    in_specs = [
        # RI_1: tiled over L1 (lanes), full C.
        pl.BlockSpec((pl.Squeezed(), C, tl1), lambda b, j: (b, 0, j)),
        # RI_2: resident across the L1 tiles of a batch.
        pl.BlockSpec((pl.Squeezed(), C, L2), lambda b, j: (b, 0, 0)),
        # RE_2: resident across the L1 tiles of a batch.
        pl.BlockSpec((pl.Squeezed(), E, L2), lambda b, j: (b, 0, 0)),
    ]
    emb_shape = jax.ShapeDtypeStruct((B, E, L1), out_dtype)
    emb_spec = pl.BlockSpec((pl.Squeezed(), E, tl1), lambda b, j: (b, 0, j))
    if return_attention:
        out_shape = (emb_shape, jax.ShapeDtypeStruct((B, L2, L1), attn_dtype))
        out_specs = [emb_spec,
                     pl.BlockSpec((pl.Squeezed(), L2, tl1),
                                  lambda b, j: (b, 0, j))]
    else:
        out_shape = emb_shape
        out_specs = emb_spec

    outs = pl.pallas_call(
        _make_kernel(return_attention, compute_dtype),
        out_shape=out_shape,
        grid_spec=pltpu.PrefetchScalarGridSpec(
            num_scalar_prefetch=0,
            grid=grid,
            in_specs=in_specs,
            out_specs=out_specs,
        ),
        compiler_params=pltpu.CompilerParams(
            dimension_semantics=("parallel", "parallel"),
            vmem_limit_bytes=vmem_limit,
        ),
    )(ri_1, ri_2, re_2)

    if return_attention:
        emb, attn = outs
        return emb, attn
    return outs


def aligner_reference(ri_1, ri_2, re_2):
    """Pure-JAX reference (highest precision so the tolerance check is fair)."""
    scores = jnp.einsum("bcm,bcn->bmn", ri_2, ri_1,
                        precision=lax.Precision.HIGHEST)
    attn = jax.nn.softmax(scores, axis=1)
    emb = jnp.einsum("bem,bmn->ben", re_2, attn,
                     precision=lax.Precision.HIGHEST)
    return emb, attn


if __name__ == "__main__":
    key = jax.random.PRNGKey(0)
    k1, k2, k3 = jax.random.split(key, 3)

    # Small shapes consistent with the module: B=2, C=4 (shared RI channels),
    # E=8 (RE_2 embedding dim), L1=L2=16.
    B, C, E, L1, L2 = 2, 4, 8, 16, 16
    ri_1 = jax.random.normal(k1, (B, C, L1), jnp.float32)
    ri_2 = jax.random.normal(k2, (B, C, L2), jnp.float32)
    re_2 = jax.random.normal(k3, (B, E, L2), jnp.float32)

    emb, attn = aligner_forward(ri_1, ri_2, re_2)
    emb, attn = jax.block_until_ready((emb, attn))

    emb_ref, attn_ref = aligner_reference(ri_1, ri_2, re_2)
    assert emb.shape == (B, E, L1), emb.shape
    assert attn.shape == (B, L2, L1), attn.shape
    assert jnp.allclose(attn, attn_ref, atol=1e-5, rtol=1e-5), "attn mismatch"
    assert jnp.allclose(emb, emb_ref, atol=1e-5, rtol=1e-5), "embed mismatch"

    print("KERNEL_OK")
</pallas_src>

<mosaic_0001>
module attributes {stable_mosaic.version = 11 : i64} {
  func.func @kernel(%arg0: i32, %arg1: i32, %arg2: memref<1x4x16xf32, #tpu.memory_space<vmem>>, %arg3: memref<1x4x16xf32, #tpu.memory_space<vmem>>, %arg4: memref<1x8x16xf32, #tpu.memory_space<vmem>>, %arg5: memref<1x8x16xf32, #tpu.memory_space<vmem>>, %arg6: memref<1x16x16xf32, #tpu.memory_space<vmem>>) attributes {dimension_semantics = [#tpu.dimension_semantics<parallel>, #tpu.dimension_semantics<parallel>], iteration_bounds = array<i64: 2, 1>, scalar_prefetch = 0 : i64, scratch_operands = 0 : i64, tpu.core_type = #tpu.core_type<tc>, window_params = [{transform_indices = @transform_0, window_bounds = array<i64: 1, 4, 16>}, {transform_indices = @transform_1, window_bounds = array<i64: 1, 4, 16>}, {transform_indices = @transform_2, window_bounds = array<i64: 1, 8, 16>}, {transform_indices = @transform_3, window_bounds = array<i64: 1, 8, 16>}, {transform_indices = @transform_4, window_bounds = array<i64: 1, 16, 16>}]} {
    %c0 = arith.constant 0 : index
    %c0_0 = arith.constant 0 : index
    %c0_1 = arith.constant 0 : index
    %0 = vector.load %arg2[%c0, %c0_0, %c0_1] : memref<1x4x16xf32, #tpu.memory_space<vmem>>, vector<1x4x16xf32>
    %1 = vector.shape_cast %0 : vector<1x4x16xf32> to vector<4x16xf32>
    %c0_2 = arith.constant 0 : index
    %c0_3 = arith.constant 0 : index
    %c0_4 = arith.constant 0 : index
    %2 = vector.load %arg3[%c0_2, %c0_3, %c0_4] : memref<1x4x16xf32, #tpu.memory_space<vmem>>, vector<1x4x16xf32>
    %3 = vector.shape_cast %2 : vector<1x4x16xf32> to vector<4x16xf32>
    %c0_5 = arith.constant 0 : index
    %c0_6 = arith.constant 0 : index
    %c0_7 = arith.constant 0 : index
    %4 = vector.load %arg4[%c0_5, %c0_6, %c0_7] : memref<1x8x16xf32, #tpu.memory_space<vmem>>, vector<1x8x16xf32>
    %5 = vector.shape_cast %4 : vector<1x8x16xf32> to vector<8x16xf32>
    %cst = arith.constant dense<0.000000e+00> : vector<16x16xf32>
    %6 = tpu.matmul %3, %1, %cst {dimension_numbers = #tpu.dot_dimension_numbers<[0], [0], [1], [1], [0, 1, 1, 1], [], []>} : vector<4x16xf32>, vector<4x16xf32>, vector<16x16xf32> -> vector<16x16xf32>
    %cst_8 = arith.constant dense<0xFF800000> : vector<16xf32>
    %7 = vector.multi_reduction <maximumf>, %6, %cst_8 [0] : vector<16x16xf32> to vector<16xf32>
    %8 = vector.shape_cast %7 : vector<16xf32> to vector<1x16xf32>
    %9 = vector.broadcast %8 : vector<1x16xf32> to vector<16x16xf32>
    %10 = arith.subf %6, %9 : vector<16x16xf32>
    %11 = math.exp %10 : vector<16x16xf32>
    %cst_9 = arith.constant dense<0.000000e+00> : vector<16xf32>
    %12 = vector.multi_reduction <add>, %11, %cst_9 [0] : vector<16x16xf32> to vector<16xf32>
    %13 = vector.shape_cast %12 : vector<16xf32> to vector<1x16xf32>
    %14 = tpu.reciprocal %13 {approx = true} : vector<1x16xf32> -> vector<1x16xf32>
    %15 = arith.mulf %13, %14 : vector<1x16xf32>
    %cst_10 = arith.constant 2.000000e+00 : f32
    %16 = vector.broadcast %cst_10 : f32 to vector<1x16xf32>
    %17 = arith.subf %16, %15 : vector<1x16xf32>
    %18 = arith.mulf %14, %17 : vector<1x16xf32>
    %19 = vector.broadcast %18 : vector<1x16xf32> to vector<16x16xf32>
    %20 = arith.mulf %11, %19 : vector<16x16xf32>
    %c0_11 = arith.constant 0 : index
    %c0_12 = arith.constant 0 : index
    %c0_13 = arith.constant 0 : index
    %21 = vector.load %arg6[%c0_11, %c0_12, %c0_13] : memref<1x16x16xf32, #tpu.memory_space<vmem>>, vector<1x16x16xf32>
    %22 = vector.shape_cast %21 : vector<1x16x16xf32> to vector<16x16xf32>
    %23 = vector.shape_cast %20 : vector<16x16xf32> to vector<1x16x16xf32>
    tpu.vector_store %arg6[%c0_11, %c0_12, %c0_13], %23 {strides = array<i32>} : memref<1x16x16xf32, #tpu.memory_space<vmem>>, vector<1x16x16xf32>,
    %cst_14 = arith.constant dense<0.000000e+00> : vector<8x16xf32>
    %24 = tpu.matmul %5, %20, %cst_14 {dimension_numbers = #tpu.dot_dimension_numbers<[1], [0], [0], [1], [0, 0, 1, 1], [], []>} : vector<8x16xf32>, vector<16x16xf32>, vector<8x16xf32> -> vector<8x16xf32>
    %c0_15 = arith.constant 0 : index
    %c0_16 = arith.constant 0 : index
    %c0_17 = arith.constant 0 : index
    %25 = vector.load %arg5[%c0_15, %c0_16, %c0_17] : memref<1x8x16xf32, #tpu.memory_space<vmem>>, vector<1x8x16xf32>
    %26 = vector.shape_cast %25 : vector<1x8x16xf32> to vector<8x16xf32>
    %27 = vector.shape_cast %24 : vector<8x16xf32> to vector<1x8x16xf32>
    tpu.vector_store %arg5[%c0_15, %c0_16, %c0_17], %27 {strides = array<i32>} : memref<1x8x16xf32, #tpu.memory_space<vmem>>, vector<1x8x16xf32>,
    return
  }
  func.func @transform_0(%arg0: i32, %arg1: i32) -> (i32, i32, i32) {
    %c0_i32 = arith.constant 0 : i32
    %c0_i32_0 = arith.constant 0 : i32
    return %arg0, %c0_i32, %arg1 : i32, i32, i32
  }
  func.func @transform_1(%arg0: i32, %arg1: i32) -> (i32, i32, i32) {
    %c0_i32 = arith.constant 0 : i32
    %c0_i32_0 = arith.constant 0 : i32
    %c0_i32_1 = arith.constant 0 : i32
    return %arg0, %c0_i32, %c0_i32_0 : i32, i32, i32
  }
  func.func @transform_2(%arg0: i32, %arg1: i32) -> (i32, i32, i32) {
    %c0_i32 = arith.constant 0 : i32
    %c0_i32_0 = arith.constant 0 : i32
    %c0_i32_1 = arith.constant 0 : i32
    return %arg0, %c0_i32, %c0_i32_0 : i32, i32, i32
  }
  func.func @transform_3(%arg0: i32, %arg1: i32) -> (i32, i32, i32) {
    %c0_i32 = arith.constant 0 : i32
    %c0_i32_0 = arith.constant 0 : i32
    return %arg0, %c0_i32, %arg1 : i32, i32, i32
  }
  func.func @transform_4(%arg0: i32, %arg1: i32) -> (i32, i32, i32) {
    %c0_i32 = arith.constant 0 : i32
    %c0_i32_0 = arith.constant 0 : i32
    return %arg0, %c0_i32, %arg1 : i32, i32, i32
  }
}

</mosaic_0001>

<llo_original>
// kernel: tpu_custom_call.1
$region0: #{tpu_custom_call.1}
  #allocation0 [shape = 'u32[]', space=smem, size = 0x4, offset = 0x4, fixed_abs, tag = 'smem constant byte address 0x4 - core index']
  #allocation1 [shape = 'u32[144,128]{1,0:T(1,128)}', space=vmem, size = 0x12000, scoped, tag = 'internal scratch']
  %s0 = inlined_call_operand.hbm [shape: f32[2,4,16], index: 0, kind: input, shape index: {}]
  %s1 = inlined_call_operand.hbm [shape: f32[2,4,16], index: 1, kind: input, shape index: {}]
  %s2 = inlined_call_operand.hbm [shape: f32[2,8,16], index: 2, kind: input, shape index: {}]
  %s3 = inlined_call_operand.hbm [shape: f32[2,8,16], index: 3, kind: output, shape index: {0}]
  %s4 = inlined_call_operand.hbm [shape: f32[2,16,16], index: 4, kind: output, shape index: {1}]
  %5 = xla_tuple %s3, %s4
  %s6 = sld [smem:[#allocation0]]
  $region65: #{tpu_custom_call.1} parent=0
    _
  %s8 = ssub.s32 1, %s6
  %s9 = scalar_select 0, %s8, %s6
  $region1: #{tpu_custom_call.1} parent=0
    #allocation2 [shape = 'u8[4096]{0}', space=vmem, size = 0x1000, scoped, tag = 'input window, operand 0']
    #allocation3 [shape = 's32[2]{0}', space=sflag, size = 0x8, scoped, tag = 'scoped memory for tpu_custom_call.1']
    #allocation4 [shape = 's32[2]{0}', space=sflag, size = 0x8, scoped, tag = 'scoped memory for tpu_custom_call.1']
    #allocation5 [shape = 'u8[4096]{0}', space=vmem, size = 0x1000, scoped, tag = 'input window, operand 1']
    #allocation6 [shape = 's32[2]{0}', space=sflag, size = 0x8, scoped, tag = 'scoped memory for tpu_custom_call.1']
    #allocation7 [shape = 'u8[8192]{0}', space=vmem, size = 0x2000, scoped, tag = 'input window, operand 2']
    #allocation8 [shape = 'u8[8192]{0}', space=vmem, size = 0x2000, scoped, tag = 'output window, operand 0']
    #allocation9 [shape = 'u8[16384]{0}', space=vmem, size = 0x4000, scoped, tag = 'output window, operand 1']
    #allocation10 [shape = 's32[2]{0}', space=sflag, size = 0x8, scoped, tag = 'scoped memory for tpu_custom_call.1']
    %10 = vsyncpa [#allocation3], 0
    %s11 = scalar_lea.sflag [#allocation3], 1
    %12 = vsyncpa %s11, 0
    %13 = vsyncpa [#allocation6], 0
    %s14 = scalar_lea.sflag [#allocation6], 1
    %15 = vsyncpa %s14, 0
    %16 = vsyncpa [#allocation4], 0
    %s17 = scalar_lea.sflag [#allocation4], 1
    %18 = vsyncpa %s17, 0
    %19 = vsyncpa [#allocation10], 0
    %s20 = scalar_lea.sflag [#allocation10], 1
    %21 = vsyncpa %s20, 0
    loop: start=0, step=1, limit=4
    $region2: #{tpu_custom_call.1} parent=1 // loop_pre_header
      _
    $region3: #{tpu_custom_call.1} parent=1 // loop_header
      %s23 = sphi 0, %s27
      %p24 = scmp.ge.s32.totalorder %s23, 4
      %s30 = sphi 0, %s42
      %s31 = sphi 0, %s38
      %s32 = sphi 0, %s30
      %s33 = sphi 0, %s31
      %s34 = sphi 0, %s32
      %s35 = sphi 0, %s33
      %s47 = sphi 0, %s49
      %s50 = sphi 0, %s47
      %s51 = sphi 0, %s50
      %s67 = sphi 0, %s51
      %s73 = sphi 0, %s75
      %s76 = sphi 0, %s73
      %s77 = sphi 0, %s76
      %s93 = sphi 0, %s77
      %s99 = sphi 0, %s101
      %s102 = sphi 0, %s99
      %s103 = sphi 0, %s102
      %s119 = sphi 0, %s103
      %s127 = sphi 0, %s129
      %s130 = sphi 0, %s127
      %s131 = sphi 0, %s130
      %s147 = sphi 0, %s131
      %s155 = sphi 0, %s157
      %s158 = sphi 0, %s155
      %s159 = sphi 0, %s158
      %s175 = sphi 0, %s159
    $region4: #{tpu_custom_call.1} parent=1 // loop_header_branch
      %26 = sbr.rel (%p24) target = $region8
    $region5: #{tpu_custom_call.1} parent=1 // loop_body
      %s28 = ssub.s32 %s23, 1
      %s29 = ssub.s32 %s23, 2
      %s36 = sadd.s32 1, %s31
      %p37 = scmp.ge.s32.totalorder %s36, 1
      %s38 = scalar_select %p37, 0, %s36
      %s39 = sadd.s32 1, %s30
      %s40 = scalar_select %p37, %s39, %s30
      %p41 = scmp.ge.s32.totalorder %s40, 2
      %s42 = scalar_select %p41, 0, %s40
      %s43 = ssub.s32 %s30, %s42
      %s44 = ssub.s32 %s31, %s38
      %s45 = sor.u32 %s43, %s44
      %p46 = scmp.eq.s32.totalorder %s45, 0
      %s48 = sadd.s32 %s47, 1
      %s49 = scalar_select %p46, %s47, %s48
      %p52 = pneg %p46
      %p53 = scmp.eq.s32.totalorder %s23, 1
      %p54 = por %p52, %p53
      %p55 = scmp.ne.s32.totalorder %s47, %s50
      %p56 = scmp.eq.s32.totalorder %s23, 0
      %p57 = por %p55, %p56
      %p58 = scmp.ne.s32.totalorder %s47, %s50
      %p59 = scmp.eq.s32.totalorder %s28, 1
      %p60 = por %p58, %p59
      %p61 = scmp.ne.s32.totalorder %s50, %s51
      %p62 = scmp.eq.s32.totalorder %s28, 0
      %p63 = por %p61, %p62
      %p64 = scmp.ne.s32.totalorder %s50, %s51
      %p65 = scmp.eq.s32.totalorder %s29, 1
      %p66 = por %p64, %p65
      %p68 = scmp.ne.s32.totalorder %s51, %s67
      %p69 = scmp.eq.s32.totalorder %s29, 0
      %p70 = por %p68, %p69
      %s71 = ssub.s32 %s30, %s42
      %p72 = scmp.eq.s32.totalorder %s71, 0
      %s74 = sadd.s32 %s73, 1
      %s75 = scalar_select %p72, %s73, %s74
      %p78 = pneg %p72
      %p79 = scmp.eq.s32.totalorder %s23, 1
      %p80 = por %p78, %p79
      %p81 = scmp.ne.s32.totalorder %s73, %s76
      %p82 = scmp.eq.s32.totalorder %s23, 0
      %p83 = por %p81, %p82
      %p84 = scmp.ne.s32.totalorder %s73, %s76
      %p85 = scmp.eq.s32.totalorder %s28, 1
      %p86 = por %p84, %p85
      %p87 = scmp.ne.s32.totalorder %s76, %s77
      %p88 = scmp.eq.s32.totalorder %s28, 0
      %p89 = por %p87, %p88
      %p90 = scmp.ne.s32.totalorder %s76, %s77
      %p91 = scmp.eq.s32.totalorder %s29, 1
      %p92 = por %p90, %p91
      %p94 = scmp.ne.s32.totalorder %s77, %s93
      %p95 = scmp.eq.s32.totalorder %s29, 0
      %p96 = por %p94, %p95
      %s97 = ssub.s32 %s30, %s42
      %p98 = scmp.eq.s32.totalorder %s97, 0
      %s100 = sadd.s32 %s99, 1
      %s101 = scalar_select %p98, %s99, %s100
      %p104 = pneg %p98
      %p105 = scmp.eq.s32.totalorder %s23, 1
      %p106 = por %p104, %p105
      %p107 = scmp.ne.s32.totalorder %s99, %s102
      %p108 = scmp.eq.s32.totalorder %s23, 0
      %p109 = por %p107, %p108
      %p110 = scmp.ne.s32.totalorder %s99, %s102
      %p111 = scmp.eq.s32.totalorder %s28, 1
      %p112 = por %p110, %p111
      %p113 = scmp.ne.s32.totalorder %s102, %s103
      %p114 = scmp.eq.s32.totalorder %s28, 0
      %p115 = por %p113, %p114
      %p116 = scmp.ne.s32.totalorder %s102, %s103
      %p117 = scmp.eq.s32.totalorder %s29, 1
      %p118 = por %p116, %p117
      %p120 = scmp.ne.s32.totalorder %s103, %s119
      %p121 = scmp.eq.s32.totalorder %s29, 0
      %p122 = por %p120, %p121
      %s123 = ssub.s32 %s30, %s42
      %s124 = ssub.s32 %s31, %s38
      %s125 = sor.u32 %s123, %s124
      %p126 = scmp.eq.s32.totalorder %s125, 0
      %s128 = sadd.s32 %s127, 1
      %s129 = scalar_select %p126, %s127, %s128
      %p132 = pneg %p126
      %p133 = scmp.eq.s32.totalorder %s23, 1
      %p134 = por %p132, %p133
      %p135 = scmp.ne.s32.totalorder %s127, %s130
      %p136 = scmp.eq.s32.totalorder %s23, 0
      %p137 = por %p135, %p136
      %p138 = scmp.ne.s32.totalorder %s127, %s130
      %p139 = scmp.eq.s32.totalorder %s28, 1
      %p140 = por %p138, %p139
      %p141 = scmp.ne.s32.totalorder %s130, %s131
      %p142 = scmp.eq.s32.totalorder %s28, 0
      %p143 = por %p141, %p142
      %p144 = scmp.ne.s32.totalorder %s130, %s131
      %p145 = scmp.eq.s32.totalorder %s29, 1
      %p146 = por %p144, %p145
      %p148 = scmp.ne.s32.totalorder %s131, %s147
      %p149 = scmp.eq.s32.totalorder %s29, 0
      %p150 = por %p148, %p149
      %s151 = ssub.s32 %s30, %s42
      %s152 = ssub.s32 %s31, %s38
      %s153 = sor.u32 %s151, %s152
      %p154 = scmp.eq.s32.totalorder %s153, 0
      %s156 = sadd.s32 %s155, 1
      %s157 = scalar_select %p154, %s155, %s156
      %p160 = pneg %p154
      %p161 = scmp.eq.s32.totalorder %s23, 1
      %p162 = por %p160, %p161
      %p163 = scmp.ne.s32.totalorder %s155, %s158
      %p164 = scmp.eq.s32.totalorder %s23, 0
      %p165 = por %p163, %p164
      %p166 = scmp.ne.s32.totalorder %s155, %s158
      %p167 = scmp.eq.s32.totalorder %s28, 1
      %p168 = por %p166, %p167
      %p169 = scmp.ne.s32.totalorder %s158, %s159
      %p170 = scmp.eq.s32.totalorder %s28, 0
      %p171 = por %p169, %p170
      %p172 = scmp.ne.s32.totalorder %s158, %s159
      %p173 = scmp.eq.s32.totalorder %s29, 1
      %p174 = por %p172, %p173
      %p176 = scmp.ne.s32.totalorder %s159, %s175
      %p177 = scmp.eq.s32.totalorder %s29, 0
      %p178 = por %p176, %p177
      %p179 = scmp.le.s32.totalorder 1, %s23
      %p180 = scmp.lt.s32.totalorder %s23, 3
      %p181 = pnand %p179, %p180
      %p182 = pneg %p181
      // Predicated region
      $region9: #{tpu_custom_call.1} parent=5 // pred_check
        _
      $region10: #{tpu_custom_call.1} parent=5 // pred_check_branch
        %184 = sbr.rel (%p181) target = $region12
      $region11: #{tpu_custom_call.1} parent=5 // pred_region
        %s185 = ssub.s32 %s23, 1
      $region12: #{tpu_custom_call.1} parent=5 // pred_fallthru
        _
      %p186 = scmp.lt.s32.totalorder %s23, 2
      // Predicated region
      $region13: #{tpu_custom_call.1} parent=5 // pred_check
        %p187 = pneg %p186
      $region14: #{tpu_custom_call.1} parent=5 // pred_check_branch
        %189 = sbr.rel (%p187) target = $region16
      $region15: #{tpu_custom_call.1} parent=5 // pred_region
        // Predicated region
        $region17: #{tpu_custom_call.1} parent=15 // pred_check
          %p190 = pneg %p57
        $region18: #{tpu_custom_call.1} parent=15 // pred_check_branch
          %192 = sbr.rel (%p190) target = $region20
        $region19: #{tpu_custom_call.1} parent=15 // pred_region
          %s193 = sand.u32 %s47, 1
          %s194 = scalar_lea.sflag [#allocation3], %s193
          %s195 = sand.u32 %s47, 1
          %s196 = smul.addr %s195, 4
          %s197 = scalar_lea.vmem [#allocation2], %s196
          %s199 = ssub.s32 64, 64
          %200 = vsyncadd %s194, %s199
          %s201 = sadd.s32 %s31, %s30
          %s202 = smul.addr %s201, 64
          %s203 = scalar_lea.hbm %s0, %s202
          %s205 = sshll.u32 %s197, 4
          %s206 = int_to_ptr.vmem [resolvable:$true] %s205
          %208 = dma.hbm_to_vmem [thread:$0]  %s203, 64, %s206, %s194
        $region20: #{tpu_custom_call.1} parent=15 // pred_fallthru
          _
        // Predicated region
        $region21: #{tpu_custom_call.1} parent=15 // pred_check
          %p209 = pneg %p83
        $region22: #{tpu_custom_call.1} parent=15 // pred_check_branch
          %211 = sbr.rel (%p209) target = $region24
        $region23: #{tpu_custom_call.1} parent=15 // pred_region
          %s212 = sand.u32 %s23, 1
          %s213 = scalar_lea.sflag [#allocation6], %s212
          %s214 = sand.u32 %s73, 1
          %s215 = smul.addr %s214, 4
          %s216 = scalar_lea.vmem [#allocation5], %s215
          %s218 = ssub.s32 64, 64
          %219 = vsyncadd %s213, %s218
          %s220 = smul.addr %s30, 64
          %s221 = scalar_lea.hbm %s1, %s220
          %s223 = sshll.u32 %s216, 4
          %s224 = int_to_ptr.vmem [resolvable:$true] %s223
          %226 = dma.hbm_to_vmem [thread:$0]  %s221, 64, %s224, %s213
        $region24: #{tpu_custom_call.1} parent=15 // pred_fallthru
          _
        // Predicated region
        $region25: #{tpu_custom_call.1} parent=15 // pred_check
          %p227 = pneg %p109
        $region26: #{tpu_custom_call.1} parent=15 // pred_check_branch
          %229 = sbr.rel (%p227) target = $region28
        $region27: #{tpu_custom_call.1} parent=15 // pred_region
          %s230 = sand.u32 %s23, 1
          %s231 = scalar_lea.sflag [#allocation6], %s230
          %s232 = sand.u32 %s99, 1
          %s233 = smul.addr %s232, 8
          %s234 = scalar_lea.vmem [#allocation7], %s233
          %s236 = ssub.s32 128, 128
          %237 = vsyncadd %s231, %s236
          %s238 = smul.addr %s30, 128
          %s239 = scalar_lea.hbm %s2, %s238
          %s241 = sshll.u32 %s234, 4
          %s242 = int_to_ptr.vmem [resolvable:$true] %s241
          %244 = dma.hbm_to_vmem [thread:$0]  %s239, 128, %s242, %s231
        $region28: #{tpu_custom_call.1} parent=15 // pred_fallthru
          _
      $region16: #{tpu_custom_call.1} parent=5 // pred_fallthru
        _
      %p245 = scmp.le.s32.totalorder 1, %s23
      %p246 = scmp.lt.s32.totalorder %s23, 3
      %p247 = pnand %p245, %p246
      %p248 = pneg %p247
      // Predicated region
      $region29: #{tpu_custom_call.1} parent=5 // pred_check
        _
      $region30: #{tpu_custom_call.1} parent=5 // pred_check_branch
        %250 = sbr.rel (%p247) target = $region32
      $region31: #{tpu_custom_call.1} parent=5 // pred_region
        %s251 = ssub.s32 %s23, 1
        %s252 = sand.u32 %s50, 1
        %s253 = scalar_lea.sflag [#allocation3], %s252
        %s254 = sand.u32 %s50, 1
        %s255 = smul.addr %s254, 4
        %s256 = scalar_lea.vmem [#allocation2], %s255
        // Predicated region
        $region33: #{tpu_custom_call.1} parent=31 // pred_check
          %p257 = pneg %p63
        $region34: #{tpu_custom_call.1} parent=31 // pred_check_branch
          %259 = sbr.rel (%p257) target = $region36
        $region35: #{tpu_custom_call.1} parent=31 // pred_region
          %260 = dma.done %s253, 64
        $region36: #{tpu_custom_call.1} parent=31 // pred_fallthru
          _
        %s261 = sand.u32 %s28, 1
        %s262 = scalar_lea.sflag [#allocation6], %s261
        %s263 = sand.u32 %s76, 1
        %s264 = smul.addr %s263, 4
        %s265 = scalar_lea.vmem [#allocation5], %s264
        // Predicated region
        $region37: #{tpu_custom_call.1} parent=31 // pred_check
          %p266 = pneg %p89
        $region38: #{tpu_custom_call.1} parent=31 // pred_check_branch
          %268 = sbr.rel (%p266) target = $region40
        $region39: #{tpu_custom_call.1} parent=31 // pred_region
          %269 = dma.done %s262, 64
        $region40: #{tpu_custom_call.1} parent=31 // pred_fallthru
          _
        %s270 = sand.u32 %s28, 1
        %s271 = scalar_lea.sflag [#allocation6], %s270
        %s272 = sand.u32 %s102, 1
        %s273 = smul.addr %s272, 8
        %s274 = scalar_lea.vmem [#allocation7], %s273
        // Predicated region
        $region41: #{tpu_custom_call.1} parent=31 // pred_check
          %p275 = pneg %p115
        $region42: #{tpu_custom_call.1} parent=31 // pred_check_branch
          %277 = sbr.rel (%p275) target = $region44
        $region43: #{tpu_custom_call.1} parent=31 // pred_region
          %278 = dma.done %s271, 128
        $region44: #{tpu_custom_call.1} parent=31 // pred_fallthru
          _
        %s279 = sand.u32 %s50, 1
        %s280 = scalar_lea.sflag [#allocation3], %s279
        %s281 = sand.u32 %s50, 1
        %s282 = smul.addr %s281, 4
        %s283 = scalar_lea.vmem [#allocation2], %s282
        %p284 = pneg %p63
        %p285 = pneg %p60
        %s286 = sand.u32 %s28, 1
        %s287 = scalar_lea.sflag [#allocation6], %s286
        %s288 = sand.u32 %s76, 1
        %s289 = smul.addr %s288, 4
        %s290 = scalar_lea.vmem [#allocation5], %s289
        %p291 = pneg %p89
        %p292 = pneg %p86
        %s293 = sand.u32 %s28, 1
        %s294 = scalar_lea.sflag [#allocation6], %s293
        %s295 = sand.u32 %s102, 1
        %s296 = smul.addr %s295, 8
        %s297 = scalar_lea.vmem [#allocation7], %s296
        %p298 = pneg %p115
        %p299 = pneg %p112
        %p300 = pneg %p143
        %p301 = pneg %p140
        %s302 = sand.u32 %s130, 1
        %s303 = scalar_lea.sflag [#allocation4], %s302
        %s304 = sand.u32 %s130, 1
        %s305 = smul.addr %s304, 8
        %s306 = scalar_lea.vmem [#allocation8], %s305
        %p307 = pneg %p171
        %p308 = pneg %p168
        %s309 = sand.u32 %s158, 1
        %s310 = scalar_lea.sflag [#allocation10], %s309
        %s311 = sand.u32 %s158, 1
        %s312 = smul.addr %s311, 16
        %s313 = scalar_lea.vmem [#allocation9], %s312
        %v314 = vld [vmem:[%s256] sm:$0xf]
        %v315 = vld [vmem:[%s265] sm:$0xf]
        %v316 = vld [vmem:[%s274] sm:$0xff]
        %317 = vxpose.xlu0.b32.start [1/16] %v315, 128
        %318 = vxpose.xlu0.b32.cont [2/16] 0.0, 128
        %319 = vxpose.xlu0.b32.cont [3/16] 0.0, 128
        %320 = vxpose.xlu0.b32.cont [4/16] 0.0, 128
        %321 = vxpose.xlu0.b32.cont [5/16] 0.0, 128
        %322 = vxpose.xlu0.b32.cont [6/16] 0.0, 128
        %323 = vxpose.xlu0.b32.cont [7/16] 0.0, 128
        %324 = vxpose.xlu0.b32.cont [8/16] 0.0, 128
        %325 = vxpose.xlu0.b32.cont [9/16] 0.0, 128
        %326 = vxpose.xlu0.b32.cont [10/16] 0.0, 128
        %327 = vxpose.xlu0.b32.cont [11/16] 0.0, 128
        %328 = vxpose.xlu0.b32.cont [12/16] 0.0, 128
        %329 = vxpose.xlu0.b32.cont [13/16] 0.0, 128
        %330 = vxpose.xlu0.b32.cont [14/16] 0.0, 128
        %331 = vxpose.xlu0.b32.cont [15/16] 0.0, 128
        %332 = vxpose.xlu0.b32.end [16/16] 0.0, 128
        %v333 = vpop.trf.xlu0
        %v334 = vpop.trf.xlu0
        %v335 = vpop.trf.xlu0
        %v336 = vpop.trf.xlu0
        %v337 = vpop.trf.xlu0
        %v338 = vpop.trf.xlu0
        %v339 = vpop.trf.xlu0
        %v340 = vpop.trf.xlu0
        %v341 = vpop.trf.xlu0
        %v342 = vpop.trf.xlu0
        %v343 = vpop.trf.xlu0
        %v344 = vpop.trf.xlu0
        %v345 = vpop.trf.xlu0
        %v346 = vpop.trf.xlu0
        %v347 = vpop.trf.xlu0
        %v348 = vpop.trf.xlu0
        %vm349 = vcmask 31744
        %v351 = vsel %vm349, %v333, 0
        %v354 = vsel %vm349, %v334, 0
        %vm356 = vcmask 1043456
        %v358 = vsel %vm356, %v314, 0
        %360 = vmatprep.subr.mxu0 0.0
        %361 = vmatpush1.msra.mxu0 %v358
        %362 = vmatprep.subr.mxu0 0.0
        %363 = vmatpush1.msra.mxu0 0.0
        %364 = vmatprep.subr.mxu0 0.0
        %365 = vmatpush1.msra.mxu0 0.0
        %366 = vmatprep.subr.mxu0 0.0
        %367 = vmatpush1.msra.mxu0 0.0
        %368 = vmatprep.subr.mxu0 0.0
        %369 = vmatpush1.msra.mxu0 0.0
        %370 = vmatprep.subr.mxu0 0.0
        %371 = vmatpush1.msra.mxu0 0.0
        %372 = vmatprep.subr.mxu0 0.0
        %373 = vmatpush1.msra.mxu0 0.0
        %374 = vmatprep.subr.mxu0 0.0
        %375 = vmatpush1.msra.mxu0 0.0
        %376 = vmatprep.subr.mxu0 0.0
        %377 = vmatpush1.msra.mxu0 0.0
        %378 = vmatprep.subr.mxu0 0.0
        %379 = vmatpush1.msra.mxu0 0.0
        %380 = vmatprep.subr.mxu0 0.0
        %381 = vmatpush1.msra.mxu0 0.0
        %382 = vmatprep.subr.mxu0 0.0
        %383 = vmatpush1.msra.mxu0 0.0
        %384 = vmatprep.subr.mxu0 0.0
        %385 = vmatpush1.msra.mxu0 0.0
        %386 = vmatprep.subr.mxu0 0.0
        %387 = vmatpush1.msra.mxu0 0.0
        %388 = vmatprep.subr.mxu0 0.0
        %389 = vmatpush1.msra.mxu0 0.0
        %390 = vmatprep.subr.mxu0 0.0
        %391 = vmatpush1.msra.mxu0 0.0
        %392 = vmatprep.subr.mxu0 0.0
        %393 = vmatpush1.msra.mxu0 0.0
        %394 = vmatprep.subr.mxu0 0.0
        %395 = vmatpush1.msra.mxu0 0.0
        %396 = vmatprep.subr.mxu0 0.0
        %397 = vmatpush1.msra.mxu0 0.0
        %398 = vmatprep.subr.mxu0 0.0
        %399 = vmatpush1.msra.mxu0 0.0
        %400 = vmatprep.subr.mxu0 0.0
        %401 = vmatpush1.msra.mxu0 0.0
        %402 = vmatprep.subr.mxu0 0.0
        %403 = vmatpush1.msra.mxu0 0.0
        %404 = vmatprep.subr.mxu0 0.0
        %405 = vmatpush1.msra.mxu0 0.0
        %406 = vmatprep.subr.mxu0 0.0
        %407 = vmatpush1.msra.mxu0 0.0
        %408 = vmatprep.subr.mxu0 0.0
        %409 = vmatpush1.msra.mxu0 0.0
        %410 = vmatprep.subr.mxu0 0.0
        %411 = vmatpush1.msra.mxu0 0.0
        %412 = vmatprep.subr.mxu0 0.0
        %413 = vmatpush1.msra.mxu0 0.0
        %414 = vmatprep.subr.mxu0 0.0
        %415 = vmatpush1.msra.mxu0 0.0
        %416 = vmatprep.subr.mxu0 0.0
        %417 = vmatpush1.msra.mxu0 0.0
        %418 = vmatprep.subr.mxu0 0.0
        %419 = vmatpush1.msra.mxu0 0.0
        %420 = vmatprep.subr.mxu0 0.0
        %421 = vmatpush1.msra.mxu0 0.0
        %422 = vmatprep.subr.mxu0 0.0
        %423 = vmatpush1.msra.mxu0 0.0
        %424 = vmatprep.mubr.f32.mxu0 0.0
        %425 = vmatmul.mubr.f32.gmra.mrb[0].mxu0 %v351
        %v426 = vpop.f32.mrb[0].mxu0
        %v427 = vadd.f32 0.0, %v426
        %v428 = vpop.f32.mrb[0].mxu0
        %429 = vmatprep.mubr.f32.mxu0 0.0
        %430 = vmatmul.mubr.f32.gmra.mrb[0].mxu0 %v354
        %v431 = vpop.f32.mrb[0].mxu0
        %v432 = vadd.f32 0.0, %v431
        %v433 = vpop.f32.mrb[0].mxu0
        %434 = vdwg.mxu0
        %vm435 = vcmask 130048
        %v436 = vsel %vm435, %v427, -inf
        %v437 = vsel %vm435, %v432, -inf
        %v438 = vmax.f32 %v436, %v437
        %v439 = vrot.slane %v438, 4
        %v440 = vmax.f32 %v438, %v439
        %v441 = vrot.slane %v440, 2
        %v442 = vmax.f32 %v440, %v441
        %v443 = vrot.slane %v442, 1
        %v444 = vmax.f32 %v442, %v443
        %v445 = vsub.f32 %v427, %v444
        %v446 = vsub.f32 %v432, %v444
        %v447 = vmul.f32 %v445, 1.442695
        %v448 = vpow.pop %v447
        %v449 = vmul.f32 %v446, 1.442695
        %v450 = vpow.pop %v449
        %v451 = vsel %vm435, %v448, 0.0
        %v452 = vsel %vm435, %v450, 0.0
        %v453 = vadd.f32 %v451, %v452
        %v454 = vrot.slane %v453, 4
        %v455 = vadd.f32 %v453, %v454
        %v456 = vrot.slane %v455, 2
        %v457 = vadd.f32 %v455, %v456
        %v458 = vrot.slane %v457, 1
        %v459 = vadd.f32 %v457, %v458
        %v460 = vrcp.pop %v459
        %v461 = vmul.f32 %v459, %v460
        %v462 = vsub.f32 2.0, %v461
        %v463 = vmul.f32 %v460, %v462
        %v464 = vmul.f32 %v448, %v463
        %v465 = vmul.f32 %v450, %v463
        %466 = vst.msk [vmem:[%s313] sm:$0xff] %vm435, %v464
        %467 = vst.msk [vmem:[%s313 + $0x8] sm:$0xff] %vm435, %v465
        %v469 = vsel %vm435, %v316, 0
        %471 = vmatprep.subr.mxu0 0.0
        %472 = vmatpush1.msra.mxu0 %v464
        %473 = vmatprep.subr.mxu0 0.0
        %474 = vmatpush1.msra.mxu0 %v465
        %475 = vmatprep.subr.mxu0 0.0
        %476 = vmatpush1.msra.mxu0 0.0
        %477 = vmatprep.subr.mxu0 0.0
        %478 = vmatpush1.msra.mxu0 0.0
        %479 = vmatprep.subr.mxu0 0.0
        %480 = vmatpush1.msra.mxu0 0.0
        %481 = vmatprep.subr.mxu0 0.0
        %482 = vmatpush1.msra.mxu0 0.0
        %483 = vmatprep.subr.mxu0 0.0
        %484 = vmatpush1.msra.mxu0 0.0
        %485 = vmatprep.subr.mxu0 0.0
        %486 = vmatpush1.msra.mxu0 0.0
        %487 = vmatprep.subr.mxu0 0.0
        %488 = vmatpush1.msra.mxu0 0.0
        %489 = vmatprep.subr.mxu0 0.0
        %490 = vmatpush1.msra.mxu0 0.0
        %491 = vmatprep.subr.mxu0 0.0
        %492 = vmatpush1.msra.mxu0 0.0
        %493 = vmatprep.subr.mxu0 0.0
        %494 = vmatpush1.msra.mxu0 0.0
        %495 = vmatprep.subr.mxu0 0.0
        %496 = vmatpush1.msra.mxu0 0.0
        %497 = vmatprep.subr.mxu0 0.0
        %498 = vmatpush1.msra.mxu0 0.0
        %499 = vmatprep.subr.mxu0 0.0
        %500 = vmatpush1.msra.mxu0 0.0
        %501 = vmatprep.subr.mxu0 0.0
        %502 = vmatpush1.msra.mxu0 0.0
        %503 = vmatprep.subr.mxu0 0.0
        %504 = vmatpush1.msra.mxu0 0.0
        %505 = vmatprep.subr.mxu0 0.0
        %506 = vmatpush1.msra.mxu0 0.0
        %507 = vmatprep.subr.mxu0 0.0
        %508 = vmatpush1.msra.mxu0 0.0
        %509 = vmatprep.subr.mxu0 0.0
        %510 = vmatpush1.msra.mxu0 0.0
        %511 = vmatprep.subr.mxu0 0.0
        %512 = vmatpush1.msra.mxu0 0.0
        %513 = vmatprep.subr.mxu0 0.0
        %514 = vmatpush1.msra.mxu0 0.0
        %515 = vmatprep.subr.mxu0 0.0
        %516 = vmatpush1.msra.mxu0 0.0
        %517 = vmatprep.subr.mxu0 0.0
        %518 = vmatpush1.msra.mxu0 0.0
        %519 = vmatprep.subr.mxu0 0.0
        %520 = vmatpush1.msra.mxu0 0.0
        %521 = vmatprep.subr.mxu0 0.0
        %522 = vmatpush1.msra.mxu0 0.0
        %523 = vmatprep.subr.mxu0 0.0
        %524 = vmatpush1.msra.mxu0 0.0
        %525 = vmatprep.subr.mxu0 0.0
        %526 = vmatpush1.msra.mxu0 0.0
        %527 = vmatprep.subr.mxu0 0.0
        %528 = vmatpush1.msra.mxu0 0.0
        %529 = vmatprep.subr.mxu0 0.0
        %530 = vmatpush1.msra.mxu0 0.0
        %531 = vmatprep.subr.mxu0 0.0
        %532 = vmatpush1.msra.mxu0 0.0
        %533 = vmatprep.subr.mxu0 0.0
        %534 = vmatpush1.msra.mxu0 0.0
        %535 = vmatprep.mubr.f32.mxu0 0.0
        %536 = vmatmul.mubr.f32.gmra.mrb[0].mxu0 %v469
        %v537 = vpop.f32.mrb[0].mxu0
        %v538 = vadd.f32 0.0, %v537
        %v539 = vpop.f32.mrb[0].mxu0
        %540 = vdwg.mxu0
        %541 = vst.msk [vmem:[%s306] sm:$0xff] %vm435, %v538
        %s542 = sand.u32 %s130, 1
        %s543 = scalar_lea.sflag [#allocation4], %s542
        %s544 = sand.u32 %s130, 1
        %s545 = smul.addr %s544, 8
        %s546 = scalar_lea.vmem [#allocation8], %s545
        %s547 = sand.u32 %s158, 1
        %s548 = scalar_lea.sflag [#allocation10], %s547
        %s549 = sand.u32 %s158, 1
        %s550 = smul.addr %s549, 16
        %s551 = scalar_lea.vmem [#allocation9], %s550
        // Predicated region
        $region45: #{tpu_custom_call.1} parent=31 // pred_check
          %p552 = pneg %p140
        $region46: #{tpu_custom_call.1} parent=31 // pred_check_branch
          %554 = sbr.rel (%p552) target = $region48
        $region47: #{tpu_custom_call.1} parent=31 // pred_region
          %s556 = ssub.s32 128, 128
          %557 = vsyncadd %s543, %s556
          %s558 = sadd.s32 %s33, %s32
          %s559 = smul.addr %s558, 128
          %s560 = scalar_lea.hbm %s3, %s559
          %s562 = sshll.u32 %s546, 4
          %s563 = int_to_ptr.vmem [resolvable:$true] %s562
          %565 = dma.vmem_to_hbm [thread:$0]  %s563, 128, %s560, %s543
        $region48: #{tpu_custom_call.1} parent=31 // pred_fallthru
          _
        // Predicated region
        $region49: #{tpu_custom_call.1} parent=31 // pred_check
          %p566 = pneg %p168
        $region50: #{tpu_custom_call.1} parent=31 // pred_check_branch
          %568 = sbr.rel (%p566) target = $region52
        $region51: #{tpu_custom_call.1} parent=31 // pred_region
          %s570 = ssub.s32 256, 256
          %571 = vsyncadd %s548, %s570
          %s572 = smul.addr %s32, 2
          %s573 = sadd.s32 %s33, %s572
          %s574 = smul.addr %s573, 128
          %s575 = scalar_lea.hbm %s4, %s574
          %s576 = sshll.u32 %s551, 4
          %s577 = int_to_ptr.vmem [resolvable:$true] %s576
          %582 = dma.vmem_to_hbm [thread:$0]  %s577, 256, %s575, %s548, 128, 128, 8
        $region52: #{tpu_custom_call.1} parent=31 // pred_fallthru
          _
      $region32: #{tpu_custom_call.1} parent=5 // pred_fallthru
        _
      %p583 = scmp.le.s32.totalorder 2, %s23
      // Predicated region
      $region53: #{tpu_custom_call.1} parent=5 // pred_check
        %p584 = pneg %p583
      $region54: #{tpu_custom_call.1} parent=5 // pred_check_branch
        %586 = sbr.rel (%p584) target = $region56
      $region55: #{tpu_custom_call.1} parent=5 // pred_region
        %s587 = ssub.s32 %s23, 2
        // Predicated region
        $region57: #{tpu_custom_call.1} parent=55 // pred_check
          %p588 = pneg %p146
        $region58: #{tpu_custom_call.1} parent=55 // pred_check_branch
          %590 = sbr.rel (%p588) target = $region60
        $region59: #{tpu_custom_call.1} parent=55 // pred_region
          %s591 = sand.u32 %s131, 1
          %s592 = scalar_lea.sflag [#allocation4], %s591
          %s593 = sand.u32 %s131, 1
          %s594 = smul.addr %s593, 8
          %s595 = scalar_lea.vmem [#allocation8], %s594
          %596 = dma.done %s592, 128
        $region60: #{tpu_custom_call.1} parent=55 // pred_fallthru
          _
        // Predicated region
        $region61: #{tpu_custom_call.1} parent=55 // pred_check
          %p597 = pneg %p174
        $region62: #{tpu_custom_call.1} parent=55 // pred_check_branch
          %599 = sbr.rel (%p597) target = $region64
        $region63: #{tpu_custom_call.1} parent=55 // pred_region
          %s600 = sand.u32 %s159, 1
          %s601 = scalar_lea.sflag [#allocation10], %s600
          %s602 = sand.u32 %s159, 1
          %s603 = smul.addr %s602, 16
          %s604 = scalar_lea.vmem [#allocation9], %s603
          %605 = dma.done %s601, 256
        $region64: #{tpu_custom_call.1} parent=55 // pred_fallthru
          _
      $region56: #{tpu_custom_call.1} parent=5 // pred_fallthru
        _
    $region6: #{tpu_custom_call.1} parent=1 // loop_footer
      %s27 = sadd.s32 1, %s23
    $region7: #{tpu_custom_call.1} parent=1 // loop_footer_branch
      %22 = sbr.rel target = $region3
    $region8: #{tpu_custom_call.1} parent=1 // loop_exit
      _
    %606 = vsyncpa [#allocation3], 1
    %s607 = scalar_lea.sflag [#allocation3], 1
    %608 = vsyncpa %s607, 1
    %609 = vsyncpa [#allocation6], 1
    %s610 = scalar_lea.sflag [#allocation6], 1
    %611 = vsyncpa %s610, 1
    %612 = vsyncpa [#allocation4], 1
    %s613 = scalar_lea.sflag [#allocation4], 1
    %614 = vsyncpa %s613, 1
    %615 = vsyncpa [#allocation10], 1
    %s616 = scalar_lea.sflag [#allocation10], 1
    %617 = vsyncpa %s616, 1

</llo_original>
